<compile_context>
chip_gen: v7x
topology: tpu7x:2x2x1
jax: 0.10.0
libtpu: 0.0.40
codegen_flags: <defaults>
</compile_context>

<pallas_src>
import jax
import jax.numpy as jnp
from jax.experimental import pallas as pl
from jax.experimental.pallas import tpu as pltpu

_LANE = 128      # lane width (last dim)


def _round_up(x, m):
    return (x + m - 1) // m * m


# ----------------------------------------------------------------------------
# Pallas kernel: out[B, NP] = x[B, KP](bf16) @ w[KP, NP](bf16) + b[1, NP](f32)
# Weights/bias are pre-padded lane-dense (NP multiple of 128) outside the
# kernel; the whole arrays live in VMEM as single blocks, so no grid and no
# software pipeline are instantiated.  The dot accumulates in f32 on the MXU.
# ----------------------------------------------------------------------------
def fc_kernel(x_ref, w_ref, b_ref, o_ref):
    x = x_ref[...]                                            # [B,  KP] bf16
    w = w_ref[...]                                            # [KP, NP] bf16
    b = b_ref[...]                                            # [1,  NP] f32
    acc = jnp.dot(x, w, preferred_element_type=jnp.float32)   # MXU, f32 acc
    o_ref[...] = (acc + b).astype(o_ref.dtype)


def fc_forward(feature_bf16, weight_p, bias_p, num_class):
    """feature_bf16: [B, KP] bf16, weight_p: [KP, NP] bf16, bias_p: [1, NP] f32.

    Returns logits [B, NP] f32 (caller slices off padded columns).
    """
    B, KP = feature_bf16.shape
    KPw, NP = weight_p.shape
    assert KP == KPw

    # Logical (unpadded) flops; real byte traffic (bf16 inputs, f32 bias/out).
    cost = pl.CostEstimate(
        flops=2 * B * KP * num_class,
        transcendentals=0,
        bytes_accessed=(B * KP * 2) + (KP * NP * 2) + (NP * 4) + (B * NP * 4),
    )

    return pl.pallas_call(
        fc_kernel,
        out_shape=jax.ShapeDtypeStruct((B, NP), jnp.float32),
        in_specs=[
            pl.BlockSpec(memory_space=pltpu.MemorySpace.VMEM),
            pl.BlockSpec(memory_space=pltpu.MemorySpace.VMEM),
            pl.BlockSpec(memory_space=pltpu.MemorySpace.VMEM),
        ],
        out_specs=pl.BlockSpec(memory_space=pltpu.MemorySpace.VMEM),
        cost_estimate=cost,
    )(feature_bf16, weight_p, bias_p)


def prepare_fc_params(fc_w, fc_b):
    """Pad + cast fc parameters once (outside the kernel).

    fc_w: [K, N] (already transposed from PyTorch's [N, K]) -> [KP, NP] bf16
    fc_b: [N]                                               -> [1, NP] f32
    Zero-padding keeps the math exact; padded output columns are sliced off.
    """
    K, N = fc_w.shape
    KP = _round_up(K, _LANE)
    NP = _round_up(N, _LANE)
    w_p = jnp.pad(fc_w.astype(jnp.float32),
                  ((0, KP - K), (0, NP - N))).astype(jnp.bfloat16)
    b_p = jnp.pad(fc_b.astype(jnp.float32), (0, NP - N)).reshape(1, NP)
    return w_p, b_p


def net_forward(x_nchw, fc_w_padded, fc_b_padded, num_class):
    """Net.forward minus the external backbone:
    x_nchw: backbone output [B, C, H, W] -> flatten(start_dim=1) -> fc (Pallas).
    """
    B = x_nchw.shape[0]
    feature = x_nchw.reshape(B, -1)                      # torch.flatten(x, 1)
    K = feature.shape[1]
    KP = fc_w_padded.shape[0]
    if KP != K:                                          # K pad only if needed
        feature = jnp.pad(feature, ((0, 0), (0, KP - K)))
    feature_bf16 = feature.astype(jnp.bfloat16)          # no row padding
    out_p = fc_forward(feature_bf16, fc_w_padded, fc_b_padded, num_class)
    return out_p[:, :num_class]


if __name__ == "__main__":
    # Module hyper-params (small, consistent with Net.__init__):
    width = 64
    proj_in = width * 8      # 512
    num_class = 10
    batch = 2

    key = jax.random.PRNGKey(0)
    k_x, k_w, k_b = jax.random.split(key, 3)

    # Backbone output features (globally pooled: H = W = 1), NCHW layout.
    x = jax.random.normal(k_x, (batch, proj_in, 1, 1), dtype=jnp.float32)

    # Deterministic fc parameters (nn.Linear(proj_in, num_class, bias=True)),
    # stored pre-transposed as [K, N].
    bound = 1.0 / jnp.sqrt(jnp.float32(proj_in))
    fc_w = jax.random.uniform(k_w, (proj_in, num_class),
                              minval=-bound, maxval=bound, dtype=jnp.float32)
    fc_b = jax.random.uniform(k_b, (num_class,),
                              minval=-bound, maxval=bound, dtype=jnp.float32)

    # One-time, outside-the-kernel parameter padding + bf16 cast.
    fc_w_p, fc_b_p = prepare_fc_params(fc_w, fc_b)

    fwd = jax.jit(net_forward, static_argnums=(3,))
    out = fwd(x, fc_w_p, fc_b_p, num_class)
    out = jax.block_until_ready(out)
    assert out.shape == (batch, num_class)

    # Reference 1: full-f32 PyTorch-equivalent math, bf16-appropriate tolerance.
    feat = x.reshape(batch, -1)
    ref_f32 = feat @ fc_w + fc_b
    assert jnp.allclose(out, ref_f32, atol=2e-2, rtol=2e-2)

    # Reference 2: bf16-cast inputs, f32 math (matches the kernel's numerics).
    ref_bf16 = (feat.astype(jnp.bfloat16).astype(jnp.float32)
                @ fc_w.astype(jnp.bfloat16).astype(jnp.float32)) + fc_b
    assert jnp.allclose(out, ref_bf16, atol=1e-4, rtol=1e-4)

    print("KERNEL_OK")
</pallas_src>

<mosaic_0001>
module attributes {stable_mosaic.version = 11 : i64} {
  func.func @fc_kernel(%arg0: memref<2x512xbf16, #tpu.memory_space<vmem>>, %arg1: memref<512x128xbf16, #tpu.memory_space<vmem>>, %arg2: memref<1x128xf32, #tpu.memory_space<vmem>>, %arg3: memref<2x128xf32, #tpu.memory_space<vmem>>) attributes {dimension_semantics = [], scalar_prefetch = 0 : i64, scratch_operands = 0 : i64, tpu.core_type = #tpu.core_type<tc>} {
    %c0 = arith.constant 0 : index
    %c0_0 = arith.constant 0 : index
    %0 = vector.load %arg0[%c0, %c0_0] : memref<2x512xbf16, #tpu.memory_space<vmem>>, vector<2x512xbf16>
    %c0_1 = arith.constant 0 : index
    %c0_2 = arith.constant 0 : index
    %1 = vector.load %arg1[%c0_1, %c0_2] : memref<512x128xbf16, #tpu.memory_space<vmem>>, vector<512x128xbf16>
    %c0_3 = arith.constant 0 : index
    %c0_4 = arith.constant 0 : index
    %2 = vector.load %arg2[%c0_3, %c0_4] : memref<1x128xf32, #tpu.memory_space<vmem>>, vector<1x128xf32>
    %cst = arith.constant dense<0.000000e+00> : vector<2x128xf32>
    %3 = tpu.matmul %0, %1, %cst {dimension_numbers = #tpu.dot_dimension_numbers<[1], [0], [0], [1], [0, 0, 1, 1], [], []>} : vector<2x512xbf16>, vector<512x128xbf16>, vector<2x128xf32> -> vector<2x128xf32>
    %4 = vector.broadcast %2 : vector<1x128xf32> to vector<2x128xf32>
    %5 = arith.addf %3, %4 : vector<2x128xf32>
    %c0_5 = arith.constant 0 : index
    %c0_6 = arith.constant 0 : index
    %6 = vector.load %arg3[%c0_5, %c0_6] : memref<2x128xf32, #tpu.memory_space<vmem>>, vector<2x128xf32>
    tpu.vector_store %arg3[%c0_5, %c0_6], %5 {strides = array<i32>} : memref<2x128xf32, #tpu.memory_space<vmem>>, vector<2x128xf32>,
    return
  }
}

</mosaic_0001>

<llo_original>
// kernel: net_forward.1
$region0: #{net_forward.1}
  #allocation0 [shape = 'u32[]', space=smem, size = 0x4, offset = 0x4, fixed_abs, tag = 'smem constant byte address 0x4 - core index']
  #allocation1 [shape = 'u32[144,128]{1,0:T(1,128)}', space=vmem, size = 0x12000, scoped, tag = 'internal scratch']
  %s0 = inlined_call_operand.vmem [shape: bf16[2,512], index: 0, kind: input, shape index: {}]
  %s1 = inlined_call_operand.hbm [shape: bf16[512,128], index: 1, kind: input, shape index: {}]
  %s2 = inlined_call_operand.vmem [shape: f32[1,128], index: 2, kind: input, shape index: {}]
  %s3 = inlined_call_operand.hbm [shape: f32[2,128], index: 3, kind: output, shape index: {}]
  %s4 = sld [smem:[#allocation0]]
  $region26: #{net_forward.1} parent=0
    _
  %s6 = ssub.s32 1, %s4
  %s7 = scalar_select 0, %s6, %s4
  $region1: #{net_forward.1} parent=0
    #allocation2 [shape = 'u8[131072]{0}', space=vmem, size = 0x20000, scoped, tag = 'input window, operand 1, single buffered']
    #allocation3 [shape = 's32[1]{0}', space=sflag, size = 0x4, scoped, tag = 'scoped memory for net_forward.1']
    #allocation4 [shape = 's32[1]{0}', space=sflag, size = 0x4, scoped, tag = 'scoped memory for net_forward.1']
    #allocation5 [shape = 'u8[1024]{0}', space=vmem, size = 0x400, scoped, tag = 'output window, operand 0, single buffered']
    %8 = vsyncpa [#allocation3], 0
    %9 = vsyncpa [#allocation4], 0
    // Predicated region
    $region2: #{net_forward.1} parent=1 // pred_check
      _
    $region3: #{net_forward.1} parent=1 // pred_check_branch
      %11 = sbr.rel (0) target = $region5
    $region4: #{net_forward.1} parent=1 // pred_region
      _
    $region5: #{net_forward.1} parent=1 // pred_fallthru
      _
    // Predicated region
    $region6: #{net_forward.1} parent=1 // pred_check
      _
    $region7: #{net_forward.1} parent=1 // pred_check_branch
      %13 = sbr.rel (0) target = $region9
    $region8: #{net_forward.1} parent=1 // pred_region
      %s15 = ssub.s32 4096, 4096
      %16 = vsyncadd [#allocation3], %s15
      %s17 = sshll.u32 [#allocation2], 4
      %s18 = int_to_ptr.vmem [resolvable:$true] %s17
      %23 = dma.hbm_to_vmem [thread:$0]  %s1, 4096, %s18, [#allocation3], 64, 64, 4
    $region9: #{net_forward.1} parent=1 // pred_fallthru
      _
    // Predicated region
    $region10: #{net_forward.1} parent=1 // pred_check
      _
    $region11: #{net_forward.1} parent=1 // pred_check_branch
      %25 = sbr.rel (0) target = $region13
    $region12: #{net_forward.1} parent=1 // pred_region
      _
    $region13: #{net_forward.1} parent=1 // pred_fallthru
      _
    // Predicated region
    $region14: #{net_forward.1} parent=1 // pred_check
      _
    $region15: #{net_forward.1} parent=1 // pred_check_branch
      %27 = sbr.rel (0) target = $region17
    $region16: #{net_forward.1} parent=1 // pred_region
      %28 = dma.done [#allocation3], 4096
    $region17: #{net_forward.1} parent=1 // pred_fallthru
      _
    %v30 = vld [vmem:[%s0] sm:$0xf]
    %v31 = vld [vmem:[#allocation2] sm:$0xf]
    %v32 = vld [vmem:[#allocation2 + $0x4] sm:$0xf]
    %v33 = vld [vmem:[#allocation2 + $0x8] sm:$0xf]
    %v34 = vld [vmem:[#allocation2 + $0xc] sm:$0xf]
    %v35 = vld [vmem:[#allocation2 + $0x10] sm:$0xf]
    %v36 = vld [vmem:[#allocation2 + $0x14] sm:$0xf]
    %v37 = vld [vmem:[#allocation2 + $0x18] sm:$0xf]
    %v38 = vld [vmem:[#allocation2 + $0x1c] sm:$0xf]
    %v39 = vld [vmem:[#allocation2 + $0x20] sm:$0xf]
    %v40 = vld [vmem:[#allocation2 + $0x24] sm:$0xf]
    %v41 = vld [vmem:[#allocation2 + $0x28] sm:$0xf]
    %v42 = vld [vmem:[#allocation2 + $0x2c] sm:$0xf]
    %v43 = vld [vmem:[#allocation2 + $0x30] sm:$0xf]
    %v44 = vld [vmem:[#allocation2 + $0x34] sm:$0xf]
    %v45 = vld [vmem:[#allocation2 + $0x38] sm:$0xf]
    %v46 = vld [vmem:[#allocation2 + $0x3c] sm:$0xf]
    %v47 = vld [vmem:[#allocation2 + $0x40] sm:$0xf]
    %v48 = vld [vmem:[#allocation2 + $0x44] sm:$0xf]
    %v49 = vld [vmem:[#allocation2 + $0x48] sm:$0xf]
    %v50 = vld [vmem:[#allocation2 + $0x4c] sm:$0xf]
    %v51 = vld [vmem:[#allocation2 + $0x50] sm:$0xf]
    %v52 = vld [vmem:[#allocation2 + $0x54] sm:$0xf]
    %v53 = vld [vmem:[#allocation2 + $0x58] sm:$0xf]
    %v54 = vld [vmem:[#allocation2 + $0x5c] sm:$0xf]
    %v55 = vld [vmem:[#allocation2 + $0x60] sm:$0xf]
    %v56 = vld [vmem:[#allocation2 + $0x64] sm:$0xf]
    %v57 = vld [vmem:[#allocation2 + $0x68] sm:$0xf]
    %v58 = vld [vmem:[#allocation2 + $0x6c] sm:$0xf]
    %v59 = vld [vmem:[#allocation2 + $0x70] sm:$0xf]
    %v60 = vld [vmem:[#allocation2 + $0x74] sm:$0xf]
    %v61 = vld [vmem:[#allocation2 + $0x78] sm:$0xf]
    %v62 = vld [vmem:[#allocation2 + $0x7c] sm:$0xf]
    %v63 = vld [vmem:[#allocation2 + $0x80] sm:$0xf]
    %v64 = vld [vmem:[#allocation2 + $0x84] sm:$0xf]
    %v65 = vld [vmem:[#allocation2 + $0x88] sm:$0xf]
    %v66 = vld [vmem:[#allocation2 + $0x8c] sm:$0xf]
    %v67 = vld [vmem:[#allocation2 + $0x90] sm:$0xf]
    %v68 = vld [vmem:[#allocation2 + $0x94] sm:$0xf]
    %v69 = vld [vmem:[#allocation2 + $0x98] sm:$0xf]
    %v70 = vld [vmem:[#allocation2 + $0x9c] sm:$0xf]
    %v71 = vld [vmem:[#allocation2 + $0xa0] sm:$0xf]
    %v72 = vld [vmem:[#allocation2 + $0xa4] sm:$0xf]
    %v73 = vld [vmem:[#allocation2 + $0xa8] sm:$0xf]
    %v74 = vld [vmem:[#allocation2 + $0xac] sm:$0xf]
    %v75 = vld [vmem:[#allocation2 + $0xb0] sm:$0xf]
    %v76 = vld [vmem:[#allocation2 + $0xb4] sm:$0xf]
    %v77 = vld [vmem:[#allocation2 + $0xb8] sm:$0xf]
    %v78 = vld [vmem:[#allocation2 + $0xbc] sm:$0xf]
    %v79 = vld [vmem:[#allocation2 + $0xc0] sm:$0xf]
    %v80 = vld [vmem:[#allocation2 + $0xc4] sm:$0xf]
    %v81 = vld [vmem:[#allocation2 + $0xc8] sm:$0xf]
    %v82 = vld [vmem:[#allocation2 + $0xcc] sm:$0xf]
    %v83 = vld [vmem:[#allocation2 + $0xd0] sm:$0xf]
    %v84 = vld [vmem:[#allocation2 + $0xd4] sm:$0xf]
    %v85 = vld [vmem:[#allocation2 + $0xd8] sm:$0xf]
    %v86 = vld [vmem:[#allocation2 + $0xdc] sm:$0xf]
    %v87 = vld [vmem:[#allocation2 + $0xe0] sm:$0xf]
    %v88 = vld [vmem:[#allocation2 + $0xe4] sm:$0xf]
    %v89 = vld [vmem:[#allocation2 + $0xe8] sm:$0xf]
    %v90 = vld [vmem:[#allocation2 + $0xec] sm:$0xf]
    %v91 = vld [vmem:[#allocation2 + $0xf0] sm:$0xf]
    %v92 = vld [vmem:[#allocation2 + $0xf4] sm:$0xf]
    %v93 = vld [vmem:[#allocation2 + $0xf8] sm:$0xf]
    %v94 = vld [vmem:[#allocation2 + $0xfc] sm:$0xf]
    %v95 = vld [vmem:[%s2] sm:$0x1]
    %v97 = vlaneseq
    %v98 = vshrl.u32 %v97, 7
    %v99 = vsub.s32 0, %v98
    %v100 = vrot.slane %v95, %v99
    %v104 = vunpack.c.l.s4 1966171168
    %v105 = vunpack.c.0.s8 %v104
    %v106 = vlaneseq
    %v107 = vshrl.u32 %v106, 7
    %v108 = vsub.s32 %v105, %v107
    %v109 = vrot.slane %v30, %v108
    %v110 = vcombine.high %v109, %v109
    %v112 = vunpack.c.l.s4 1966171168
    %v113 = vunpack.c.0.s8 %v112
    %v114 = vlaneseq
    %v115 = vshrl.u32 %v114, 7
    %v116 = vsub.s32 %v113, %v115
    %v117 = vrot.slane %v109, %v116
    %v119 = vunpack.c.l.s4 1966171168
    %v120 = vunpack.c.0.s8 %v119
    %v121 = vlaneseq
    %v122 = vshrl.u32 %v121, 7
    %v123 = vsub.s32 %v120, %v122
    %v124 = vrot.slane %v110, %v123
    %v125 = vcombine.high %v117, %v117
    %v126 = vcombine.high %v124, %v124
    %v195 = vunpack.c.l.b16 %v31
    %v196 = vunpack.c.l.b16 %v32
    %v197 = vunpack.c.l.b16 %v33
    %v198 = vunpack.c.l.b16 %v34
    %v199 = vunpack.c.l.b16 %v35
    %v200 = vunpack.c.l.b16 %v36
    %v201 = vunpack.c.l.b16 %v37
    %v202 = vunpack.c.l.b16 %v38
    %v203 = vunpack.c.l.b16 %v39
    %v204 = vunpack.c.l.b16 %v40
    %v205 = vunpack.c.l.b16 %v41
    %v206 = vunpack.c.l.b16 %v42
    %v207 = vunpack.c.l.b16 %v43
    %v208 = vunpack.c.l.b16 %v44
    %v209 = vunpack.c.l.b16 %v45
    %v210 = vunpack.c.l.b16 %v46
    %v211 = vunpack.c.l.b16 %v47
    %v212 = vunpack.c.l.b16 %v48
    %v213 = vunpack.c.l.b16 %v49
    %v214 = vunpack.c.l.b16 %v50
    %v215 = vunpack.c.l.b16 %v51
    %v216 = vunpack.c.l.b16 %v52
    %v217 = vunpack.c.l.b16 %v53
    %v218 = vunpack.c.l.b16 %v54
    %v219 = vunpack.c.l.b16 %v55
    %v220 = vunpack.c.l.b16 %v56
    %v221 = vunpack.c.l.b16 %v57
    %v222 = vunpack.c.l.b16 %v58
    %v223 = vunpack.c.l.b16 %v59
    %v224 = vunpack.c.l.b16 %v60
    %v225 = vunpack.c.l.b16 %v61
    %v226 = vunpack.c.l.b16 %v62
    %v227 = vunpack.c.l.b16 %v63
    %v228 = vunpack.c.l.b16 %v64
    %v229 = vunpack.c.l.b16 %v65
    %v230 = vunpack.c.l.b16 %v66
    %v231 = vunpack.c.l.b16 %v67
    %v232 = vunpack.c.l.b16 %v68
    %v233 = vunpack.c.l.b16 %v69
    %v234 = vunpack.c.l.b16 %v70
    %v235 = vunpack.c.l.b16 %v71
    %v236 = vunpack.c.l.b16 %v72
    %v237 = vunpack.c.l.b16 %v73
    %v238 = vunpack.c.l.b16 %v74
    %v239 = vunpack.c.l.b16 %v75
    %v240 = vunpack.c.l.b16 %v76
    %v241 = vunpack.c.l.b16 %v77
    %v242 = vunpack.c.l.b16 %v78
    %v243 = vunpack.c.l.b16 %v79
    %v244 = vunpack.c.l.b16 %v80
    %v245 = vunpack.c.l.b16 %v81
    %v246 = vunpack.c.l.b16 %v82
    %v247 = vunpack.c.l.b16 %v83
    %v248 = vunpack.c.l.b16 %v84
    %v249 = vunpack.c.l.b16 %v85
    %v250 = vunpack.c.l.b16 %v86
    %v251 = vunpack.c.l.b16 %v87
    %v252 = vunpack.c.l.b16 %v88
    %v253 = vunpack.c.l.b16 %v89
    %v254 = vunpack.c.l.b16 %v90
    %v255 = vunpack.c.l.b16 %v91
    %v256 = vunpack.c.l.b16 %v92
    %v257 = vunpack.c.l.b16 %v93
    %v258 = vunpack.c.l.b16 %v94
    %v259 = vpack.c.b16 %v196, %v195
    %v260 = vpack.c.b16 %v198, %v197
    %v261 = vpack.c.b16 %v200, %v199
    %v262 = vpack.c.b16 %v202, %v201
    %v263 = vpack.c.b16 %v204, %v203
    %v264 = vpack.c.b16 %v206, %v205
    %v265 = vpack.c.b16 %v208, %v207
    %v266 = vpack.c.b16 %v210, %v209
    %v267 = vpack.c.b16 %v212, %v211
    %v268 = vpack.c.b16 %v214, %v213
    %v269 = vpack.c.b16 %v216, %v215
    %v270 = vpack.c.b16 %v218, %v217
    %v271 = vpack.c.b16 %v220, %v219
    %v272 = vpack.c.b16 %v222, %v221
    %v273 = vpack.c.b16 %v224, %v223
    %v274 = vpack.c.b16 %v226, %v225
    %v275 = vpack.c.b16 %v228, %v227
    %v276 = vpack.c.b16 %v230, %v229
    %v277 = vpack.c.b16 %v232, %v231
    %v278 = vpack.c.b16 %v234, %v233
    %v279 = vpack.c.b16 %v236, %v235
    %v280 = vpack.c.b16 %v238, %v237
    %v281 = vpack.c.b16 %v240, %v239
    %v282 = vpack.c.b16 %v242, %v241
    %v283 = vpack.c.b16 %v244, %v243
    %v284 = vpack.c.b16 %v246, %v245
    %v285 = vpack.c.b16 %v248, %v247
    %v286 = vpack.c.b16 %v250, %v249
    %v287 = vpack.c.b16 %v252, %v251
    %v288 = vpack.c.b16 %v254, %v253
    %v289 = vpack.c.b16 %v256, %v255
    %v290 = vpack.c.b16 %v258, %v257
    %323 = vmatprep.subr.bf16.mxu0 0
    %324 = vmatpush1.bf16.msra.mxu0 %v259
    %325 = vmatprep.subr.bf16.mxu0 0
    %326 = vmatpush1.bf16.msra.mxu0 %v260
    %327 = vmatprep.subr.bf16.mxu0 0
    %328 = vmatpush1.bf16.msra.mxu0 %v261
    %329 = vmatprep.subr.bf16.mxu0 0
    %330 = vmatpush1.bf16.msra.mxu0 %v262
    %331 = vmatprep.subr.bf16.mxu0 0
    %332 = vmatpush1.bf16.msra.mxu0 %v263
    %333 = vmatprep.subr.bf16.mxu0 0
    %334 = vmatpush1.bf16.msra.mxu0 %v264
    %335 = vmatprep.subr.bf16.mxu0 0
    %336 = vmatpush1.bf16.msra.mxu0 %v265
    %337 = vmatprep.subr.bf16.mxu0 0
    %338 = vmatpush1.bf16.msra.mxu0 %v266
    %339 = vmatprep.subr.bf16.mxu0 0
    %340 = vmatpush1.bf16.msra.mxu0 %v267
    %341 = vmatprep.subr.bf16.mxu0 0
    %342 = vmatpush1.bf16.msra.mxu0 %v268
    %343 = vmatprep.subr.bf16.mxu0 0
    %344 = vmatpush1.bf16.msra.mxu0 %v269
    %345 = vmatprep.subr.bf16.mxu0 0
    %346 = vmatpush1.bf16.msra.mxu0 %v270
    %347 = vmatprep.subr.bf16.mxu0 0
    %348 = vmatpush1.bf16.msra.mxu0 %v271
    %349 = vmatprep.subr.bf16.mxu0 0
    %350 = vmatpush1.bf16.msra.mxu0 %v272
    %351 = vmatprep.subr.bf16.mxu0 0
    %352 = vmatpush1.bf16.msra.mxu0 %v273
    %353 = vmatprep.subr.bf16.mxu0 0
    %354 = vmatpush1.bf16.msra.mxu0 %v274
    %355 = vmatprep.mubr.bf16.mxu0 %v124
    %356 = vmatmul.mubr.bf16.gmra.mrb[0].mxu0 %v117
    %v357 = vpop.f32.mrb[0].mxu0
    %v358 = vadd.f32 %v100, %v357
    %v359 = vpop.f32.mrb[0].mxu0
    %v360 = vpop.f32.mrb[0].mxu0
    %v361 = vpop.f32.mrb[0].mxu0
    %362 = vdwg.mxu0
    %363 = vmatprep.subr.bf16.mxu0 0
    %364 = vmatpush1.bf16.msra.mxu0 %v275
    %365 = vmatprep.subr.bf16.mxu0 0
    %366 = vmatpush1.bf16.msra.mxu0 %v276
    %367 = vmatprep.subr.bf16.mxu0 0
    %368 = vmatpush1.bf16.msra.mxu0 %v277
    %369 = vmatprep.subr.bf16.mxu0 0
    %370 = vmatpush1.bf16.msra.mxu0 %v278
    %371 = vmatprep.subr.bf16.mxu0 0
    %372 = vmatpush1.bf16.msra.mxu0 %v279
    %373 = vmatprep.subr.bf16.mxu0 0
    %374 = vmatpush1.bf16.msra.mxu0 %v280
    %375 = vmatprep.subr.bf16.mxu0 0
    %376 = vmatpush1.bf16.msra.mxu0 %v281
    %377 = vmatprep.subr.bf16.mxu0 0
    %378 = vmatpush1.bf16.msra.mxu0 %v282
    %379 = vmatprep.subr.bf16.mxu0 0
    %380 = vmatpush1.bf16.msra.mxu0 %v283
    %381 = vmatprep.subr.bf16.mxu0 0
    %382 = vmatpush1.bf16.msra.mxu0 %v284
    %383 = vmatprep.subr.bf16.mxu0 0
    %384 = vmatpush1.bf16.msra.mxu0 %v285
    %385 = vmatprep.subr.bf16.mxu0 0
    %386 = vmatpush1.bf16.msra.mxu0 %v286
    %387 = vmatprep.subr.bf16.mxu0 0
    %388 = vmatpush1.bf16.msra.mxu0 %v287
    %389 = vmatprep.subr.bf16.mxu0 0
    %390 = vmatpush1.bf16.msra.mxu0 %v288
    %391 = vmatprep.subr.bf16.mxu0 0
    %392 = vmatpush1.bf16.msra.mxu0 %v289
    %393 = vmatprep.subr.bf16.mxu0 0
    %394 = vmatpush1.bf16.msra.mxu0 %v290
    %395 = vmatprep.mubr.bf16.mxu0 %v126
    %396 = vmatmul.mubr.bf16.gmra.mrb[0].mxu0 %v125
    %v397 = vpop.f32.mrb[0].mxu0
    %v398 = vadd.f32 %v358, %v397
    %v399 = vpop.f32.mrb[0].mxu0
    %v400 = vpop.f32.mrb[0].mxu0
    %v401 = vpop.f32.mrb[0].mxu0
    %402 = vdwg.mxu0
    %403 = vst [vmem:[#allocation5] sm:$0x3] %v398
    // Predicated region
    $region18: #{net_forward.1} parent=1 // pred_check
      _
    $region19: #{net_forward.1} parent=1 // pred_check_branch
      %405 = sbr.rel (0) target = $region21
    $region20: #{net_forward.1} parent=1 // pred_region
      %s407 = ssub.s32 32, 32
      %408 = vsyncadd [#allocation4], %s407
      %s410 = sshll.u32 [#allocation5], 4
      %s411 = int_to_ptr.vmem [resolvable:$true] %s410
      %413 = dma.vmem_to_hbm [thread:$0]  %s411, 32, %s3, [#allocation4]
    $region21: #{net_forward.1} parent=1 // pred_fallthru
      _
    // Predicated region
    $region22: #{net_forward.1} parent=1 // pred_check
      _
    $region23: #{net_forward.1} parent=1 // pred_check_branch
      %415 = sbr.rel (0) target = $region25
    $region24: #{net_forward.1} parent=1 // pred_region
      %416 = dma.done [#allocation4], 32
    $region25: #{net_forward.1} parent=1 // pred_fallthru
      _
    %417 = vsyncpa [#allocation3], 1
    %418 = vsyncpa [#allocation4], 1

</llo_original>
